<compile_context>
chip_gen: v7x
topology: tpu7x:2x2x1
jax: 0.10.0
libtpu: 0.0.40
codegen_flags: <defaults>
</compile_context>

<pallas_src>
import jax
import jax.numpy as jnp
import numpy as np
from jax.experimental import pallas as pl
from jax.experimental.pallas import tpu as pltpu

LAMBD = 0.2          # Hardshrink threshold
KSIZE = 3
DILATION = 2
PAD = 2              # conv padding -> "same" spatial size with dilation 2
K2 = KSIZE * KSIZE


def _make_kernel(Nb, C, H, W):
    HW = H * W
    inv_C = 1.0 / C

    # Static tap offsets (dy, dx), scan order matching OIHW weight layout.
    taps = []
    for ky in range(KSIZE):
        for kx in range(KSIZE):
            taps.append(((ky - 1) * DILATION, (kx - 1) * DILATION))

    def kernel(p_ref, mask_ref, x_ref, o_ref):
        """One batch block.

        p_ref   : SMEM (2*K2+1,) f32 -- conv weights (OIHW row-major) + bias.
        mask_ref: VMEM (K2, HW)  f32 -- per-tap zero-padding masks (dest coords).
        x_ref   : VMEM (Nb, C, HW)   -- input block (spatial flattened, lane-dense).
        o_ref   : VMEM (Nb, HW)      -- output block.
        """
        x = x_ref[...].astype(jnp.float32)          # (Nb, C, HW)
        avg = jnp.sum(x, axis=1) * inv_C            # (Nb, HW)
        mx = jnp.max(x, axis=1)                     # (Nb, HW)

        # Dilated 3x3 conv (2 in-channels -> 1 out-channel), fully unrolled.
        # Per tap: combine the two channels with their scalar weights first,
        # then do ONE roll of the combined map (roll commutes with the
        # elementwise linear combination), then one mask multiply.
        acc = jnp.zeros((Nb, HW), jnp.float32)
        for k, (dy, dx) in enumerate(taps):
            g = p_ref[k] * avg + p_ref[K2 + k] * mx          # (Nb, HW)
            off = dy * W + dx                                # flat source offset
            if off == 0:
                acc = acc + g                                # center: no roll, no mask
            else:
                tap = pltpu.roll(g, shift=(-off) % HW, axis=1)
                acc = acc + tap * mask_ref[k : k + 1, :]     # zero-pad + kill wraparound

        y = jax.nn.sigmoid(acc + p_ref[2 * K2])
        # Hardshrink(0.2): sigmoid(x) > 0, so |y| > lambd  <=>  y > lambd.
        y = jnp.where(y > LAMBD, y, 0.0)
        o_ref[...] = y.astype(o_ref.dtype)

    return kernel


def spatial_attention(x, weight, bias):
    """x: (N, C, H, W); weight: (1, 2, 3, 3); bias: (1,). Returns (N, 1, H, W)."""
    N, C, H, W = x.shape
    HW = H * W

    # Batch-block size: largest divisor of N that is <= 8, additionally capped
    # so the double-buffered blocks stay well under the VMEM budget (keeps the
    # kernel pipelined even on v7x's smaller scoped VMEM).
    vmem_cap = max(1, (8 << 20) // max(1, 2 * (C + 1) * HW * 4))
    nb_max = max(1, min(8, N, vmem_cap))
    Nb = 1
    for cand in range(nb_max, 0, -1):
        if N % cand == 0:
            Nb = cand
            break

    params = jnp.concatenate(
        [weight.reshape(-1).astype(jnp.float32), bias.reshape(-1).astype(jnp.float32)]
    )  # (2*9 + 1,)

    # Static zero-padding masks per tap (destination coordinates). They also
    # kill the cross-row / end-of-array wraparound introduced by rolling the
    # flattened lane axis. Pure structure of the conv -> built once on host.
    rows = np.repeat(np.arange(H), W)
    cols = np.tile(np.arange(W), H)
    mask_np = np.zeros((K2, HW), np.float32)
    for ky in range(KSIZE):
        dy = (ky - 1) * DILATION
        for kx in range(KSIZE):
            dx = (kx - 1) * DILATION
            k = ky * KSIZE + kx
            valid = (
                (rows + dy >= 0) & (rows + dy < H) & (cols + dx >= 0) & (cols + dx < W)
            )
            mask_np[k] = valid.astype(np.float32)
    masks = jnp.asarray(mask_np)  # (9, HW) f32

    x_flat = x.reshape(N, C, HW)  # lane-dense: H*W on the lane axis

    out_flat = pl.pallas_call(
        _make_kernel(Nb, C, H, W),
        out_shape=jax.ShapeDtypeStruct((N, HW), x.dtype),
        grid=(N // Nb,),
        in_specs=[
            pl.BlockSpec(memory_space=pltpu.MemorySpace.SMEM),   # weights + bias
            pl.BlockSpec((K2, HW), lambda n: (0, 0)),            # tap masks (constant)
            pl.BlockSpec((Nb, C, HW), lambda n: (n, 0, 0)),      # x
        ],
        out_specs=pl.BlockSpec((Nb, HW), lambda n: (n, 0)),
        compiler_params=pltpu.CompilerParams(dimension_semantics=("parallel",)),
    )(params, masks, x_flat)

    return out_flat.reshape(N, 1, H, W)


def spatial_attention_ref(x, weight, bias):
    """Pure-JAX reference mirroring the PyTorch forward."""
    avg = jnp.mean(x, axis=1, keepdims=True)
    mx = jnp.max(x, axis=1, keepdims=True)
    feat = jnp.concatenate([avg, mx], axis=1)                 # (N, 2, H, W)
    y = jax.lax.conv_general_dilated(
        feat, weight,
        window_strides=(1, 1),
        padding=((PAD, PAD), (PAD, PAD)),
        rhs_dilation=(DILATION, DILATION),
        dimension_numbers=("NCHW", "OIHW", "NCHW"),
    ) + bias.reshape(1, -1, 1, 1)
    s = jax.nn.sigmoid(y)
    return jnp.where(jnp.abs(s) > LAMBD, s, 0.0)


if __name__ == "__main__":
    key = jax.random.PRNGKey(0)
    kx, kw, kb = jax.random.split(key, 3)

    N, C, H, W = 2, 4, 16, 16
    x = jax.random.normal(kx, (N, C, H, W), dtype=jnp.float32)

    # Deterministic parameter init (Conv2d(2, 1, 3): weight (1,2,3,3), bias (1,)).
    weight = jax.random.normal(kw, (1, 2, 3, 3), dtype=jnp.float32) * 0.3
    bias = jax.random.normal(kb, (1,), dtype=jnp.float32) * 0.1

    out = jax.block_until_ready(spatial_attention(x, weight, bias))

    ref = spatial_attention_ref(x, weight, bias)
    assert out.shape == (N, 1, H, W)
    assert jnp.allclose(out, ref, atol=1e-5, rtol=1e-5), "mismatch vs reference"

    print("KERNEL_OK")
</pallas_src>

<mosaic_0001>
module attributes {stable_mosaic.version = 11 : i64} {
  func.func @kernel(%arg0: i32, %arg1: memref<19xf32, #tpu.memory_space<smem>>, %arg2: memref<9x256xf32, #tpu.memory_space<vmem>>, %arg3: memref<2x4x256xf32, #tpu.memory_space<vmem>>, %arg4: memref<2x256xf32, #tpu.memory_space<vmem>>) attributes {dimension_semantics = [#tpu.dimension_semantics<parallel>], iteration_bounds = array<i64: 1>, scalar_prefetch = 0 : i64, scratch_operands = 0 : i64, tpu.core_type = #tpu.core_type<tc>, window_params = [{transform_indices = @transform_0, window_bounds = array<i64: 19>}, {pipeline_mode = #tpu.pipeline_mode<synchronous>, transform_indices = @transform_1, window_bounds = array<i64: 9, 256>}, {transform_indices = @transform_2, window_bounds = array<i64: 2, 4, 256>}, {transform_indices = @transform_3, window_bounds = array<i64: 2, 256>}]} {
    %c0 = arith.constant 0 : index
    %c0_0 = arith.constant 0 : index
    %c0_1 = arith.constant 0 : index
    %0 = vector.load %arg3[%c0, %c0_0, %c0_1] : memref<2x4x256xf32, #tpu.memory_space<vmem>>, vector<2x4x256xf32>
    %cst = arith.constant dense<0.000000e+00> : vector<2x256xf32>
    %1 = vector.multi_reduction <add>, %0, %cst [1] : vector<2x4x256xf32> to vector<2x256xf32>
    %cst_2 = arith.constant 2.500000e-01 : f32
    %2 = vector.broadcast %cst_2 : f32 to vector<2x256xf32>
    %3 = arith.mulf %1, %2 : vector<2x256xf32>
    %cst_3 = arith.constant dense<0xFF800000> : vector<2x256xf32>
    %4 = vector.multi_reduction <maximumf>, %0, %cst_3 [1] : vector<2x4x256xf32> to vector<2x256xf32>
    %cst_4 = arith.constant 0.000000e+00 : f32
    %5 = vector.broadcast %cst_4 : f32 to vector<2x256xf32>
    %c0_5 = arith.constant 0 : index
    %6 = memref.load %arg1[%c0_5] : memref<19xf32, #tpu.memory_space<smem>>
    %7 = vector.broadcast %6 : f32 to vector<2x256xf32>
    %8 = arith.mulf %7, %3 : vector<2x256xf32>
    %c9 = arith.constant 9 : index
    %9 = memref.load %arg1[%c9] : memref<19xf32, #tpu.memory_space<smem>>
    %10 = vector.broadcast %9 : f32 to vector<2x256xf32>
    %11 = arith.mulf %10, %4 : vector<2x256xf32>
    %12 = arith.addf %8, %11 : vector<2x256xf32>
    %c34_i32 = arith.constant 34 : i32
    %13 = tpu.dynamic_rotate %12 by %c34_i32 dim 1 : vector<2x256xf32>, i32 -> vector<2x256xf32>
    %c0_6 = arith.constant 0 : index
    %c0_7 = arith.constant 0 : index
    %14 = vector.load %arg2[%c0_6, %c0_7] : memref<9x256xf32, #tpu.memory_space<vmem>>, vector<1x256xf32>
    %15 = vector.broadcast %14 : vector<1x256xf32> to vector<2x256xf32>
    %16 = arith.mulf %13, %15 : vector<2x256xf32>
    %17 = arith.addf %5, %16 : vector<2x256xf32>
    %c1 = arith.constant 1 : index
    %18 = memref.load %arg1[%c1] : memref<19xf32, #tpu.memory_space<smem>>
    %19 = vector.broadcast %18 : f32 to vector<2x256xf32>
    %20 = arith.mulf %19, %3 : vector<2x256xf32>
    %c10 = arith.constant 10 : index
    %21 = memref.load %arg1[%c10] : memref<19xf32, #tpu.memory_space<smem>>
    %22 = vector.broadcast %21 : f32 to vector<2x256xf32>
    %23 = arith.mulf %22, %4 : vector<2x256xf32>
    %24 = arith.addf %20, %23 : vector<2x256xf32>
    %c32_i32 = arith.constant 32 : i32
    %25 = tpu.dynamic_rotate %24 by %c32_i32 dim 1 : vector<2x256xf32>, i32 -> vector<2x256xf32>
    %c1_8 = arith.constant 1 : index
    %c0_9 = arith.constant 0 : index
    %26 = vector.load %arg2[%c1_8, %c0_9] : memref<9x256xf32, #tpu.memory_space<vmem>>, vector<1x256xf32>
    %27 = vector.broadcast %26 : vector<1x256xf32> to vector<2x256xf32>
    %28 = arith.mulf %25, %27 : vector<2x256xf32>
    %29 = arith.addf %17, %28 : vector<2x256xf32>
    %c2 = arith.constant 2 : index
    %30 = memref.load %arg1[%c2] : memref<19xf32, #tpu.memory_space<smem>>
    %31 = vector.broadcast %30 : f32 to vector<2x256xf32>
    %32 = arith.mulf %31, %3 : vector<2x256xf32>
    %c11 = arith.constant 11 : index
    %33 = memref.load %arg1[%c11] : memref<19xf32, #tpu.memory_space<smem>>
    %34 = vector.broadcast %33 : f32 to vector<2x256xf32>
    %35 = arith.mulf %34, %4 : vector<2x256xf32>
    %36 = arith.addf %32, %35 : vector<2x256xf32>
    %c30_i32 = arith.constant 30 : i32
    %37 = tpu.dynamic_rotate %36 by %c30_i32 dim 1 : vector<2x256xf32>, i32 -> vector<2x256xf32>
    %c2_10 = arith.constant 2 : index
    %c0_11 = arith.constant 0 : index
    %38 = vector.load %arg2[%c2_10, %c0_11] : memref<9x256xf32, #tpu.memory_space<vmem>>, vector<1x256xf32>
    %39 = vector.broadcast %38 : vector<1x256xf32> to vector<2x256xf32>
    %40 = arith.mulf %37, %39 : vector<2x256xf32>
    %41 = arith.addf %29, %40 : vector<2x256xf32>
    %c3 = arith.constant 3 : index
    %42 = memref.load %arg1[%c3] : memref<19xf32, #tpu.memory_space<smem>>
    %43 = vector.broadcast %42 : f32 to vector<2x256xf32>
    %44 = arith.mulf %43, %3 : vector<2x256xf32>
    %c12 = arith.constant 12 : index
    %45 = memref.load %arg1[%c12] : memref<19xf32, #tpu.memory_space<smem>>
    %46 = vector.broadcast %45 : f32 to vector<2x256xf32>
    %47 = arith.mulf %46, %4 : vector<2x256xf32>
    %48 = arith.addf %44, %47 : vector<2x256xf32>
    %c2_i32 = arith.constant 2 : i32
    %49 = tpu.dynamic_rotate %48 by %c2_i32 dim 1 : vector<2x256xf32>, i32 -> vector<2x256xf32>
    %c3_12 = arith.constant 3 : index
    %c0_13 = arith.constant 0 : index
    %50 = vector.load %arg2[%c3_12, %c0_13] : memref<9x256xf32, #tpu.memory_space<vmem>>, vector<1x256xf32>
    %51 = vector.broadcast %50 : vector<1x256xf32> to vector<2x256xf32>
    %52 = arith.mulf %49, %51 : vector<2x256xf32>
    %53 = arith.addf %41, %52 : vector<2x256xf32>
    %c4 = arith.constant 4 : index
    %54 = memref.load %arg1[%c4] : memref<19xf32, #tpu.memory_space<smem>>
    %55 = vector.broadcast %54 : f32 to vector<2x256xf32>
    %56 = arith.mulf %55, %3 : vector<2x256xf32>
    %c13 = arith.constant 13 : index
    %57 = memref.load %arg1[%c13] : memref<19xf32, #tpu.memory_space<smem>>
    %58 = vector.broadcast %57 : f32 to vector<2x256xf32>
    %59 = arith.mulf %58, %4 : vector<2x256xf32>
    %60 = arith.addf %56, %59 : vector<2x256xf32>
    %61 = arith.addf %53, %60 : vector<2x256xf32>
    %c5 = arith.constant 5 : index
    %62 = memref.load %arg1[%c5] : memref<19xf32, #tpu.memory_space<smem>>
    %63 = vector.broadcast %62 : f32 to vector<2x256xf32>
    %64 = arith.mulf %63, %3 : vector<2x256xf32>
    %c14 = arith.constant 14 : index
    %65 = memref.load %arg1[%c14] : memref<19xf32, #tpu.memory_space<smem>>
    %66 = vector.broadcast %65 : f32 to vector<2x256xf32>
    %67 = arith.mulf %66, %4 : vector<2x256xf32>
    %68 = arith.addf %64, %67 : vector<2x256xf32>
    %c254_i32 = arith.constant 254 : i32
    %69 = tpu.dynamic_rotate %68 by %c254_i32 dim 1 : vector<2x256xf32>, i32 -> vector<2x256xf32>
    %c5_14 = arith.constant 5 : index
    %c0_15 = arith.constant 0 : index
    %70 = vector.load %arg2[%c5_14, %c0_15] : memref<9x256xf32, #tpu.memory_space<vmem>>, vector<1x256xf32>
    %71 = vector.broadcast %70 : vector<1x256xf32> to vector<2x256xf32>
    %72 = arith.mulf %69, %71 : vector<2x256xf32>
    %73 = arith.addf %61, %72 : vector<2x256xf32>
    %c6 = arith.constant 6 : index
    %74 = memref.load %arg1[%c6] : memref<19xf32, #tpu.memory_space<smem>>
    %75 = vector.broadcast %74 : f32 to vector<2x256xf32>
    %76 = arith.mulf %75, %3 : vector<2x256xf32>
    %c15 = arith.constant 15 : index
    %77 = memref.load %arg1[%c15] : memref<19xf32, #tpu.memory_space<smem>>
    %78 = vector.broadcast %77 : f32 to vector<2x256xf32>
    %79 = arith.mulf %78, %4 : vector<2x256xf32>
    %80 = arith.addf %76, %79 : vector<2x256xf32>
    %c226_i32 = arith.constant 226 : i32
    %81 = tpu.dynamic_rotate %80 by %c226_i32 dim 1 : vector<2x256xf32>, i32 -> vector<2x256xf32>
    %c6_16 = arith.constant 6 : index
    %c0_17 = arith.constant 0 : index
    %82 = vector.load %arg2[%c6_16, %c0_17] : memref<9x256xf32, #tpu.memory_space<vmem>>, vector<1x256xf32>
    %83 = vector.broadcast %82 : vector<1x256xf32> to vector<2x256xf32>
    %84 = arith.mulf %81, %83 : vector<2x256xf32>
    %85 = arith.addf %73, %84 : vector<2x256xf32>
    %c7 = arith.constant 7 : index
    %86 = memref.load %arg1[%c7] : memref<19xf32, #tpu.memory_space<smem>>
    %87 = vector.broadcast %86 : f32 to vector<2x256xf32>
    %88 = arith.mulf %87, %3 : vector<2x256xf32>
    %c16 = arith.constant 16 : index
    %89 = memref.load %arg1[%c16] : memref<19xf32, #tpu.memory_space<smem>>
    %90 = vector.broadcast %89 : f32 to vector<2x256xf32>
    %91 = arith.mulf %90, %4 : vector<2x256xf32>
    %92 = arith.addf %88, %91 : vector<2x256xf32>
    %c224_i32 = arith.constant 224 : i32
    %93 = tpu.dynamic_rotate %92 by %c224_i32 dim 1 : vector<2x256xf32>, i32 -> vector<2x256xf32>
    %c7_18 = arith.constant 7 : index
    %c0_19 = arith.constant 0 : index
    %94 = vector.load %arg2[%c7_18, %c0_19] : memref<9x256xf32, #tpu.memory_space<vmem>>, vector<1x256xf32>
    %95 = vector.broadcast %94 : vector<1x256xf32> to vector<2x256xf32>
    %96 = arith.mulf %93, %95 : vector<2x256xf32>
    %97 = arith.addf %85, %96 : vector<2x256xf32>
    %c8 = arith.constant 8 : index
    %98 = memref.load %arg1[%c8] : memref<19xf32, #tpu.memory_space<smem>>
    %99 = vector.broadcast %98 : f32 to vector<2x256xf32>
    %100 = arith.mulf %99, %3 : vector<2x256xf32>
    %c17 = arith.constant 17 : index
    %101 = memref.load %arg1[%c17] : memref<19xf32, #tpu.memory_space<smem>>
    %102 = vector.broadcast %101 : f32 to vector<2x256xf32>
    %103 = arith.mulf %102, %4 : vector<2x256xf32>
    %104 = arith.addf %100, %103 : vector<2x256xf32>
    %c222_i32 = arith.constant 222 : i32
    %105 = tpu.dynamic_rotate %104 by %c222_i32 dim 1 : vector<2x256xf32>, i32 -> vector<2x256xf32>
    %c8_20 = arith.constant 8 : index
    %c0_21 = arith.constant 0 : index
    %106 = vector.load %arg2[%c8_20, %c0_21] : memref<9x256xf32, #tpu.memory_space<vmem>>, vector<1x256xf32>
    %107 = vector.broadcast %106 : vector<1x256xf32> to vector<2x256xf32>
    %108 = arith.mulf %105, %107 : vector<2x256xf32>
    %109 = arith.addf %97, %108 : vector<2x256xf32>
    %c18 = arith.constant 18 : index
    %110 = memref.load %arg1[%c18] : memref<19xf32, #tpu.memory_space<smem>>
    %111 = vector.broadcast %110 : f32 to vector<2x256xf32>
    %112 = arith.addf %109, %111 : vector<2x256xf32>
    %113 = arith.negf %112 : vector<2x256xf32>
    %114 = math.exp %113 : vector<2x256xf32>
    %cst_22 = arith.constant 1.000000e+00 : f32
    %115 = vector.broadcast %cst_22 : f32 to vector<2x256xf32>
    %116 = arith.addf %115, %114 : vector<2x256xf32>
    %117 = arith.divf %115, %116 : vector<2x256xf32>
    %cst_23 = arith.constant 2.000000e-01 : f32
    %118 = vector.broadcast %cst_23 : f32 to vector<2x256xf32>
    %119 = arith.cmpf ogt, %117, %118 : vector<2x256xf32>
    %cst_24 = arith.constant 0.000000e+00 : f32
    %120 = vector.broadcast %cst_24 : f32 to vector<2x256xf32>
    %121 = arith.select %119, %117, %120 : vector<2x256xi1>, vector<2x256xf32>
    %c0_25 = arith.constant 0 : index
    %c0_26 = arith.constant 0 : index
    %122 = vector.load %arg4[%c0_25, %c0_26] : memref<2x256xf32, #tpu.memory_space<vmem>>, vector<2x256xf32>
    tpu.vector_store %arg4[%c0_25, %c0_26], %121 {strides = array<i32>} : memref<2x256xf32, #tpu.memory_space<vmem>>, vector<2x256xf32>,
    return
  }
  func.func @transform_0(%arg0: i32) -> i32 {
    %c0_i32 = arith.constant 0 : i32
    %c0_i32_0 = arith.constant 0 : i32
    return %c0_i32 : i32
  }
  func.func @transform_1(%arg0: i32) -> (i32, i32) {
    %c0_i32 = arith.constant 0 : i32
    %c0_i32_0 = arith.constant 0 : i32
    %c0_i32_1 = arith.constant 0 : i32
    return %c0_i32, %c0_i32_0 : i32, i32
  }
  func.func @transform_2(%arg0: i32) -> (i32, i32, i32) {
    %c0_i32 = arith.constant 0 : i32
    %c0_i32_0 = arith.constant 0 : i32
    %c0_i32_1 = arith.constant 0 : i32
    return %arg0, %c0_i32, %c0_i32_0 : i32, i32, i32
  }
  func.func @transform_3(%arg0: i32) -> (i32, i32) {
    %c0_i32 = arith.constant 0 : i32
    %c0_i32_0 = arith.constant 0 : i32
    return %arg0, %c0_i32 : i32, i32
  }
}

</mosaic_0001>

<llo_original>
// kernel: tpu_custom_call.1
$region0: #{tpu_custom_call.1}
  #allocation0 [shape = 'u32[]', space=smem, size = 0x4, offset = 0x4, fixed_abs, tag = 'smem constant byte address 0x4 - core index']
  #allocation1 [shape = 'u32[144,128]{1,0:T(1,128)}', space=vmem, size = 0x12000, scoped, tag = 'internal scratch']
  %s0 = inlined_call_operand.hbm [shape: f32[19], index: 0, kind: input, shape index: {}]
  %s1 = inlined_call_operand.hbm [shape: f32[9,256], index: 1, kind: input, shape index: {}]
  %s2 = inlined_call_operand.hbm [shape: f32[2,4,256], index: 2, kind: input, shape index: {}]
  %s3 = inlined_call_operand.hbm [shape: f32[2,256], index: 3, kind: output, shape index: {}]
  %s4 = sld [smem:[#allocation0]]
  $region34: #{tpu_custom_call.1} parent=0
    _
  %s6 = ssub.s32 1, %s4
  %s7 = scalar_select 0, %s6, %s4
  $region1: #{tpu_custom_call.1} parent=0
    #allocation2 [shape = 'u8[512]{0}', space=smem, size = 0x200, scoped, tag = 'input window, operand 0, single buffered']
    #allocation3 [shape = 's32[1]{0}', space=sflag, size = 0x4, scoped, tag = 'scoped memory for tpu_custom_call.1']
    #allocation4 [shape = 's32[1]{0}', space=sflag, size = 0x4, scoped, tag = 'scoped memory for tpu_custom_call.1']
    #allocation5 [shape = 's32[1]{0}', space=sflag, size = 0x4, scoped, tag = 'scoped memory for tpu_custom_call.1']
    #allocation6 [shape = 'u8[16384]{0}', space=vmem, size = 0x4000, scoped, tag = 'input window, operand 1, single buffered']
    #allocation7 [shape = 'u8[8192]{0}', space=vmem, size = 0x2000, scoped, tag = 'input window, operand 2, single buffered']
    #allocation8 [shape = 's32[1]{0}', space=sflag, size = 0x4, scoped, tag = 'scoped memory for tpu_custom_call.1']
    #allocation9 [shape = 'u8[2048]{0}', space=vmem, size = 0x800, scoped, tag = 'output window, operand 0, single buffered']
    %8 = vsyncpa [#allocation5], 0
    %9 = vsyncpa [#allocation3], 0
    %10 = vsyncpa [#allocation8], 0
    %11 = vsyncpa [#allocation4], 0
    // Predicated region
    $region2: #{tpu_custom_call.1} parent=1 // pred_check
      _
    $region3: #{tpu_custom_call.1} parent=1 // pred_check_branch
      %13 = sbr.rel (0) target = $region5
    $region4: #{tpu_custom_call.1} parent=1 // pred_region
      %s15 = ssub.s32 16, 16
      %16 = vsyncadd [#allocation5], %s15
      %19 = dma.hbm_to_smem %s0, 16, [#allocation2], [#allocation5]
    $region5: #{tpu_custom_call.1} parent=1 // pred_fallthru
      _
    // Predicated region
    $region6: #{tpu_custom_call.1} parent=1 // pred_check
      _
    $region7: #{tpu_custom_call.1} parent=1 // pred_check_branch
      %21 = sbr.rel (0) target = $region9
    $region8: #{tpu_custom_call.1} parent=1 // pred_region
      %s23 = ssub.s32 512, 512
      %24 = vsyncadd [#allocation3], %s23
      %s25 = sshll.u32 [#allocation6], 4
      %s26 = int_to_ptr.vmem [resolvable:$true] %s25
      %31 = dma.hbm_to_vmem [thread:$0]  %s1, 512, %s26, [#allocation3], 256, 256, 16
    $region9: #{tpu_custom_call.1} parent=1 // pred_fallthru
      _
    // Predicated region
    $region10: #{tpu_custom_call.1} parent=1 // pred_check
      _
    $region11: #{tpu_custom_call.1} parent=1 // pred_check_branch
      %33 = sbr.rel (0) target = $region13
    $region12: #{tpu_custom_call.1} parent=1 // pred_region
      %s35 = ssub.s32 256, 256
      %36 = vsyncadd [#allocation8], %s35
      %s37 = sshll.u32 [#allocation7], 4
      %s38 = int_to_ptr.vmem [resolvable:$true] %s37
      %43 = dma.hbm_to_vmem [thread:$0]  %s2, 256, %s38, [#allocation8], 128, 128, 8
    $region13: #{tpu_custom_call.1} parent=1 // pred_fallthru
      _
    // Predicated region
    $region14: #{tpu_custom_call.1} parent=1 // pred_check
      _
    $region15: #{tpu_custom_call.1} parent=1 // pred_check_branch
      %45 = sbr.rel (0) target = $region17
    $region16: #{tpu_custom_call.1} parent=1 // pred_region
      %46 = dma.done [#allocation5], 16
    $region17: #{tpu_custom_call.1} parent=1 // pred_fallthru
      _
    // Predicated region
    $region18: #{tpu_custom_call.1} parent=1 // pred_check
      _
    $region19: #{tpu_custom_call.1} parent=1 // pred_check_branch
      %48 = sbr.rel (0) target = $region21
    $region20: #{tpu_custom_call.1} parent=1 // pred_region
      %49 = dma.done [#allocation3], 512
    $region21: #{tpu_custom_call.1} parent=1 // pred_fallthru
      _
    // Predicated region
    $region22: #{tpu_custom_call.1} parent=1 // pred_check
      _
    $region23: #{tpu_custom_call.1} parent=1 // pred_check_branch
      %51 = sbr.rel (0) target = $region25
    $region24: #{tpu_custom_call.1} parent=1 // pred_region
      %52 = dma.done [#allocation8], 256
    $region25: #{tpu_custom_call.1} parent=1 // pred_fallthru
      _
    %53 = sfence
    %v54 = vld [vmem:[#allocation7] sm:$0xff]
    %v55 = vld [vmem:[#allocation7 + $0x8] sm:$0xff]
    %v58 = vcombine.high %v54, %v54
    %v59 = vcombine.high %v55, %v55
    %vm62 = vcmask 1043456
    %v63 = vsel %vm62, %v54, 0.0
    %v64 = vrot.slane %v63, 4
    %v65 = vadd.f32 %v63, %v64
    %v66 = vrot.slane %v65, 2
    %v67 = vadd.f32 %v65, %v66
    %v68 = vrot.slane %v67, 1
    %v69 = vadd.f32 %v67, %v68
    %v70 = vsel %vm62, %v58, 0.0
    %v71 = vrot.slane %v70, 4
    %v72 = vadd.f32 %v70, %v71
    %v73 = vrot.slane %v72, 2
    %v74 = vadd.f32 %v72, %v73
    %v75 = vrot.slane %v74, 1
    %v76 = vadd.f32 %v74, %v75
    %v77 = vsel %vm62, %v55, 0.0
    %v78 = vrot.slane %v77, 4
    %v79 = vadd.f32 %v77, %v78
    %v80 = vrot.slane %v79, 2
    %v81 = vadd.f32 %v79, %v80
    %v82 = vrot.slane %v81, 1
    %v83 = vadd.f32 %v81, %v82
    %v84 = vsel %vm62, %v59, 0.0
    %v85 = vrot.slane %v84, 4
    %v86 = vadd.f32 %v84, %v85
    %v87 = vrot.slane %v86, 2
    %v88 = vadd.f32 %v86, %v87
    %v89 = vrot.slane %v88, 1
    %v90 = vadd.f32 %v88, %v89
    %v91 = vmul.f32 %v69, 0.25
    %v92 = vmul.f32 %v76, 0.25
    %v93 = vmul.f32 %v83, 0.25
    %v94 = vmul.f32 %v90, 0.25
    %v95 = vsel %vm62, %v54, -inf
    %v96 = vrot.slane %v95, 4
    %v97 = vmax.f32 %v95, %v96
    %v98 = vrot.slane %v97, 2
    %v99 = vmax.f32 %v97, %v98
    %v100 = vrot.slane %v99, 1
    %v101 = vmax.f32 %v99, %v100
    %v102 = vsel %vm62, %v58, -inf
    %v103 = vrot.slane %v102, 4
    %v104 = vmax.f32 %v102, %v103
    %v105 = vrot.slane %v104, 2
    %v106 = vmax.f32 %v104, %v105
    %v107 = vrot.slane %v106, 1
    %v108 = vmax.f32 %v106, %v107
    %v109 = vsel %vm62, %v55, -inf
    %v110 = vrot.slane %v109, 4
    %v111 = vmax.f32 %v109, %v110
    %v112 = vrot.slane %v111, 2
    %v113 = vmax.f32 %v111, %v112
    %v114 = vrot.slane %v113, 1
    %v115 = vmax.f32 %v113, %v114
    %v116 = vsel %vm62, %v59, -inf
    %v117 = vrot.slane %v116, 4
    %v118 = vmax.f32 %v116, %v117
    %v119 = vrot.slane %v118, 2
    %v120 = vmax.f32 %v118, %v119
    %v121 = vrot.slane %v120, 1
    %v122 = vmax.f32 %v120, %v121
    %s123 = sld [smem:[#allocation2]]
    %v124 = vstv %s123
    %v125 = vmul.f32 %v124, %v91
    %v126 = vmul.f32 %v124, %v92
    %v127 = vmul.f32 %v124, %v93
    %v128 = vmul.f32 %v124, %v94
    %s129 = sld [smem:[#allocation2 + $0x9]]
    %v130 = vstv %s129
    %v131 = vmul.f32 %v130, %v101
    %v132 = vmul.f32 %v130, %v108
    %v133 = vmul.f32 %v130, %v115
    %v134 = vmul.f32 %v130, %v122
    %v135 = vadd.f32 %v125, %v131
    %v136 = vadd.f32 %v126, %v132
    %v137 = vadd.f32 %v127, %v133
    %v138 = vadd.f32 %v128, %v134
    %vm143 = vcmask 1041409
    %v144 = vsel %vm143, %v137, %v135
    %v145 = vsel %vm143, %v138, %v136
    %148 = vrot.lane.b32.xlu0 %v144, 34
    %v149 = vpop.permute.xlu0 %148
    %150 = vrot.lane.b32.xlu0 %v145, 34
    %v151 = vpop.permute.xlu0 %150
    %v152 = vlaneseq
    %v153 = vand.u32 %v152, 127
    %vm154 = vcmp.lt.s32.totalorder %v153, 34
    %v155 = vsel %vm154, %v149, %v151
    %v156 = vsel %vm154, %v151, %v149
    %v157 = vld [vmem:[#allocation6] ss:$8 sm:$0x3]
    %v159 = vlaneseq
    %v160 = vshrl.u32 %v159, 7
    %v161 = vsub.s32 0, %v160
    %v162 = vrot.slane %v157, %v161
    %v163 = vlaneseq
    %v164 = vshrl.u32 %v163, 7
    %v165 = vsub.s32 1, %v164
    %v166 = vrot.slane %v157, %v165
    %v169 = vmul.f32 %v156, %v162
    %v170 = vmul.f32 %v155, %v166
    %v171 = vadd.f32 %v169, 0.0
    %v172 = vadd.f32 %v170, 0.0
    %s173 = sld [smem:[#allocation2 + $0x1]]
    %v174 = vstv %s173
    %v175 = vmul.f32 %v174, %v91
    %v176 = vmul.f32 %v174, %v92
    %v177 = vmul.f32 %v174, %v93
    %v178 = vmul.f32 %v174, %v94
    %s179 = sld [smem:[#allocation2 + $0xa]]
    %v180 = vstv %s179
    %v181 = vmul.f32 %v180, %v101
    %v182 = vmul.f32 %v180, %v108
    %v183 = vmul.f32 %v180, %v115
    %v184 = vmul.f32 %v180, %v122
    %v185 = vadd.f32 %v175, %v181
    %v186 = vadd.f32 %v176, %v182
    %v187 = vadd.f32 %v177, %v183
    %v188 = vadd.f32 %v178, %v184
    %v193 = vsel %vm143, %v187, %v185
    %v194 = vsel %vm143, %v188, %v186
    %197 = vrot.lane.b32.xlu0 %v193, 32
    %v198 = vpop.permute.xlu0 %197
    %199 = vrot.lane.b32.xlu0 %v194, 32
    %v200 = vpop.permute.xlu0 %199
    %vm201 = vcmp.lt.s32.totalorder %v153, 32
    %v202 = vsel %vm201, %v198, %v200
    %v203 = vsel %vm201, %v200, %v198
    %s204 = scalar_lea.vmem [#allocation6], 1
    %v205 = vld [vmem:[%s204] ss:$8 sm:$0x3]
    %v207 = vlaneseq
    %v208 = vshrl.u32 %v207, 7
    %v209 = vsub.s32 0, %v208
    %v210 = vrot.slane %v205, %v209
    %v211 = vlaneseq
    %v212 = vshrl.u32 %v211, 7
    %v213 = vsub.s32 1, %v212
    %v214 = vrot.slane %v205, %v213
    %v217 = vmul.f32 %v203, %v210
    %v218 = vmul.f32 %v202, %v214
    %v219 = vadd.f32 %v171, %v217
    %v220 = vadd.f32 %v172, %v218
    %s221 = sld [smem:[#allocation2 + $0x2]]
    %v222 = vstv %s221
    %v223 = vmul.f32 %v222, %v91
    %v224 = vmul.f32 %v222, %v92
    %v225 = vmul.f32 %v222, %v93
    %v226 = vmul.f32 %v222, %v94
    %s227 = sld [smem:[#allocation2 + $0xb]]
    %v228 = vstv %s227
    %v229 = vmul.f32 %v228, %v101
    %v230 = vmul.f32 %v228, %v108
    %v231 = vmul.f32 %v228, %v115
    %v232 = vmul.f32 %v228, %v122
    %v233 = vadd.f32 %v223, %v229
    %v234 = vadd.f32 %v224, %v230
    %v235 = vadd.f32 %v225, %v231
    %v236 = vadd.f32 %v226, %v232
    %v241 = vsel %vm143, %v235, %v233
    %v242 = vsel %vm143, %v236, %v234
    %245 = vrot.lane.b32.xlu0 %v241, 30
    %v246 = vpop.permute.xlu0 %245
    %247 = vrot.lane.b32.xlu0 %v242, 30
    %v248 = vpop.permute.xlu0 %247
    %vm249 = vcmp.lt.s32.totalorder %v153, 30
    %v250 = vsel %vm249, %v246, %v248
    %v251 = vsel %vm249, %v248, %v246
    %s252 = scalar_lea.vmem [#allocation6], 2
    %v253 = vld [vmem:[%s252] ss:$8 sm:$0x3]
    %v255 = vlaneseq
    %v256 = vshrl.u32 %v255, 7
    %v257 = vsub.s32 0, %v256
    %v258 = vrot.slane %v253, %v257
    %v259 = vlaneseq
    %v260 = vshrl.u32 %v259, 7
    %v261 = vsub.s32 1, %v260
    %v262 = vrot.slane %v253, %v261
    %v265 = vmul.f32 %v251, %v258
    %v266 = vmul.f32 %v250, %v262
    %v267 = vadd.f32 %v219, %v265
    %v268 = vadd.f32 %v220, %v266
    %s269 = sld [smem:[#allocation2 + $0x3]]
    %v270 = vstv %s269
    %v271 = vmul.f32 %v270, %v91
    %v272 = vmul.f32 %v270, %v92
    %v273 = vmul.f32 %v270, %v93
    %v274 = vmul.f32 %v270, %v94
    %s275 = sld [smem:[#allocation2 + $0xc]]
    %v276 = vstv %s275
    %v277 = vmul.f32 %v276, %v101
    %v278 = vmul.f32 %v276, %v108
    %v279 = vmul.f32 %v276, %v115
    %v280 = vmul.f32 %v276, %v122
    %v281 = vadd.f32 %v271, %v277
    %v282 = vadd.f32 %v272, %v278
    %v283 = vadd.f32 %v273, %v279
    %v284 = vadd.f32 %v274, %v280
    %v289 = vsel %vm143, %v283, %v281
    %v290 = vsel %vm143, %v284, %v282
    %293 = vrot.lane.b32.xlu0 %v289, 2
    %v294 = vpop.permute.xlu0 %293
    %295 = vrot.lane.b32.xlu0 %v290, 2
    %v296 = vpop.permute.xlu0 %295
    %vm297 = vcmp.lt.s32.totalorder %v153, 2
    %v298 = vsel %vm297, %v294, %v296
    %v299 = vsel %vm297, %v296, %v294
    %s300 = scalar_lea.vmem [#allocation6], 3
    %v301 = vld [vmem:[%s300] ss:$8 sm:$0x3]
    %v303 = vlaneseq
    %v304 = vshrl.u32 %v303, 7
    %v305 = vsub.s32 0, %v304
    %v306 = vrot.slane %v301, %v305
    %v307 = vlaneseq
    %v308 = vshrl.u32 %v307, 7
    %v309 = vsub.s32 1, %v308
    %v310 = vrot.slane %v301, %v309
    %v313 = vmul.f32 %v299, %v306
    %v314 = vmul.f32 %v298, %v310
    %v315 = vadd.f32 %v267, %v313
    %v316 = vadd.f32 %v268, %v314
    %s317 = sld [smem:[#allocation2 + $0x4]]
    %v318 = vstv %s317
    %v319 = vmul.f32 %v318, %v91
    %v320 = vmul.f32 %v318, %v92
    %v321 = vmul.f32 %v318, %v93
    %v322 = vmul.f32 %v318, %v94
    %s323 = sld [smem:[#allocation2 + $0xd]]
    %v324 = vstv %s323
    %v325 = vmul.f32 %v324, %v101
    %v326 = vmul.f32 %v324, %v108
    %v327 = vmul.f32 %v324, %v115
    %v328 = vmul.f32 %v324, %v122
    %v329 = vadd.f32 %v319, %v325
    %v330 = vadd.f32 %v320, %v326
    %v331 = vadd.f32 %v321, %v327
    %v332 = vadd.f32 %v322, %v328
    %v337 = vsel %vm143, %v331, %v329
    %v338 = vsel %vm143, %v332, %v330
    %v341 = vadd.f32 %v315, %v337
    %v342 = vadd.f32 %v316, %v338
    %s343 = sld [smem:[#allocation2 + $0x5]]
    %v344 = vstv %s343
    %v345 = vmul.f32 %v344, %v91
    %v346 = vmul.f32 %v344, %v92
    %v347 = vmul.f32 %v344, %v93
    %v348 = vmul.f32 %v344, %v94
    %s349 = sld [smem:[#allocation2 + $0xe]]
    %v350 = vstv %s349
    %v351 = vmul.f32 %v350, %v101
    %v352 = vmul.f32 %v350, %v108
    %v353 = vmul.f32 %v350, %v115
    %v354 = vmul.f32 %v350, %v122
    %v355 = vadd.f32 %v345, %v351
    %v356 = vadd.f32 %v346, %v352
    %v357 = vadd.f32 %v347, %v353
    %v358 = vadd.f32 %v348, %v354
    %v363 = vsel %vm143, %v357, %v355
    %v364 = vsel %vm143, %v358, %v356
    %367 = vrot.lane.b32.xlu0 %v363, 126
    %v368 = vpop.permute.xlu0 %367
    %369 = vrot.lane.b32.xlu0 %v364, 126
    %v370 = vpop.permute.xlu0 %369
    %vm371 = vcmp.lt.s32.totalorder %v153, 126
    %v372 = vsel %vm371, %v368, %v370
    %v373 = vsel %vm371, %v370, %v368
    %s374 = scalar_lea.vmem [#allocation6], 5
    %v375 = vld [vmem:[%s374] ss:$8 sm:$0x3]
    %v377 = vlaneseq
    %v378 = vshrl.u32 %v377, 7
    %v379 = vsub.s32 0, %v378
    %v380 = vrot.slane %v375, %v379
    %v381 = vlaneseq
    %v382 = vshrl.u32 %v381, 7
    %v383 = vsub.s32 1, %v382
    %v384 = vrot.slane %v375, %v383
    %v387 = vmul.f32 %v372, %v380
    %v388 = vmul.f32 %v373, %v384
    %v389 = vadd.f32 %v341, %v387
    %v390 = vadd.f32 %v342, %v388
    %s391 = sld [smem:[#allocation2 + $0x6]]
    %v392 = vstv %s391
    %v393 = vmul.f32 %v392, %v91
    %v394 = vmul.f32 %v392, %v92
    %v395 = vmul.f32 %v392, %v93
    %v396 = vmul.f32 %v392, %v94
    %s397 = sld [smem:[#allocation2 + $0xf]]
    %v398 = vstv %s397
    %v399 = vmul.f32 %v398, %v101
    %v400 = vmul.f32 %v398, %v108
    %v401 = vmul.f32 %v398, %v115
    %v402 = vmul.f32 %v398, %v122
    %v403 = vadd.f32 %v393, %v399
    %v404 = vadd.f32 %v394, %v400
    %v405 = vadd.f32 %v395, %v401
    %v406 = vadd.f32 %v396, %v402
    %v411 = vsel %vm143, %v405, %v403
    %v412 = vsel %vm143, %v406, %v404
    %415 = vrot.lane.b32.xlu0 %v411, 98
    %v416 = vpop.permute.xlu0 %415
    %417 = vrot.lane.b32.xlu0 %v412, 98
    %v418 = vpop.permute.xlu0 %417
    %vm419 = vcmp.lt.s32.totalorder %v153, 98
    %v420 = vsel %vm419, %v416, %v418
    %v421 = vsel %vm419, %v418, %v416
    %s422 = scalar_lea.vmem [#allocation6], 6
    %v423 = vld [vmem:[%s422] ss:$8 sm:$0x3]
    %v425 = vlaneseq
    %v426 = vshrl.u32 %v425, 7
    %v427 = vsub.s32 0, %v426
    %v428 = vrot.slane %v423, %v427
    %v429 = vlaneseq
    %v430 = vshrl.u32 %v429, 7
    %v431 = vsub.s32 1, %v430
    %v432 = vrot.slane %v423, %v431
    %v435 = vmul.f32 %v420, %v428
    %v436 = vmul.f32 %v421, %v432
    %v437 = vadd.f32 %v389, %v435
    %v438 = vadd.f32 %v390, %v436
    %s439 = sld [smem:[#allocation2 + $0x7]]
    %v440 = vstv %s439
    %v441 = vmul.f32 %v440, %v91
    %v442 = vmul.f32 %v440, %v92
    %v443 = vmul.f32 %v440, %v93
    %v444 = vmul.f32 %v440, %v94
    %s445 = sld [smem:[#allocation2 + $0x10]]
    %v446 = vstv %s445
    %v447 = vmul.f32 %v446, %v101
    %v448 = vmul.f32 %v446, %v108
    %v449 = vmul.f32 %v446, %v115
    %v450 = vmul.f32 %v446, %v122
    %v451 = vadd.f32 %v441, %v447
    %v452 = vadd.f32 %v442, %v448
    %v453 = vadd.f32 %v443, %v449
    %v454 = vadd.f32 %v444, %v450
    %v459 = vsel %vm143, %v453, %v451
    %v460 = vsel %vm143, %v454, %v452
    %463 = vrot.lane.b32.xlu0 %v459, 96
    %v464 = vpop.permute.xlu0 %463
    %465 = vrot.lane.b32.xlu0 %v460, 96
    %v466 = vpop.permute.xlu0 %465
    %vm467 = vcmp.lt.s32.totalorder %v153, 96
    %v468 = vsel %vm467, %v464, %v466
    %v469 = vsel %vm467, %v466, %v464
    %s470 = scalar_lea.vmem [#allocation6], 7
    %v471 = vld [vmem:[%s470] ss:$8 sm:$0x3]
    %v473 = vlaneseq
    %v474 = vshrl.u32 %v473, 7
    %v475 = vsub.s32 0, %v474
    %v476 = vrot.slane %v471, %v475
    %v477 = vlaneseq
    %v478 = vshrl.u32 %v477, 7
    %v479 = vsub.s32 1, %v478
    %v480 = vrot.slane %v471, %v479
    %v483 = vmul.f32 %v468, %v476
    %v484 = vmul.f32 %v469, %v480
    %v485 = vadd.f32 %v437, %v483
    %v486 = vadd.f32 %v438, %v484
    %s487 = sld [smem:[#allocation2 + $0x8]]
    %v488 = vstv %s487
    %v489 = vmul.f32 %v488, %v91
    %v490 = vmul.f32 %v488, %v92
    %v491 = vmul.f32 %v488, %v93
    %v492 = vmul.f32 %v488, %v94
    %s493 = sld [smem:[#allocation2 + $0x11]]
    %v494 = vstv %s493
    %v495 = vmul.f32 %v494, %v101
    %v496 = vmul.f32 %v494, %v108
    %v497 = vmul.f32 %v494, %v115
    %v498 = vmul.f32 %v494, %v122
    %v499 = vadd.f32 %v489, %v495
    %v500 = vadd.f32 %v490, %v496
    %v501 = vadd.f32 %v491, %v497
    %v502 = vadd.f32 %v492, %v498
    %v507 = vsel %vm143, %v501, %v499
    %v508 = vsel %vm143, %v502, %v500
    %511 = vrot.lane.b32.xlu0 %v507, 94
    %v512 = vpop.permute.xlu0 %511
    %513 = vrot.lane.b32.xlu0 %v508, 94
    %v514 = vpop.permute.xlu0 %513
    %vm515 = vcmp.lt.s32.totalorder %v153, 94
    %v516 = vsel %vm515, %v512, %v514
    %v517 = vsel %vm515, %v514, %v512
    %s518 = scalar_lea.vmem [#allocation6], 16
    %v519 = vld [vmem:[%s518] ss:$8 sm:$0x3]
    %v521 = vlaneseq
    %v522 = vshrl.u32 %v521, 7
    %v523 = vsub.s32 0, %v522
    %v524 = vrot.slane %v519, %v523
    %v525 = vlaneseq
    %v526 = vshrl.u32 %v525, 7
    %v527 = vsub.s32 1, %v526
    %v528 = vrot.slane %v519, %v527
    %v531 = vmul.f32 %v516, %v524
    %v532 = vmul.f32 %v517, %v528
    %v533 = vadd.f32 %v485, %v531
    %v534 = vadd.f32 %v486, %v532
    %s535 = sld [smem:[#allocation2 + $0x12]]
    %v536 = vstv %s535
    %v537 = vadd.f32 %v533, %v536
    %v538 = vadd.f32 %v534, %v536
    %v539 = vxor.u32 %v537, 2147483648
    %v540 = vxor.u32 %v538, 2147483648
    %v541 = vmul.f32 %v539, 1.442695
    %v542 = vpow.pop %v541
    %v543 = vmul.f32 %v540, 1.442695
    %v544 = vpow.pop %v543
    %v545 = vadd.f32 %v542, 1.0
    %v546 = vadd.f32 %v544, 1.0
    %v547 = vrcp.pop %v545
    %v548 = vmul.f32 1.0, %v547
    %v549 = vrcp.pop %v546
    %v550 = vmul.f32 1.0, %v549
    %vm551 = vcmp.gt.f32.partialorder %v548, 0.2
    %vm552 = vcmp.gt.f32.partialorder %v550, 0.2
    %v553 = vsel %vm551, %v548, 0.0
    %v554 = vsel %vm552, %v550, 0.0
    %v557 = vcombine.low %v553, %v554
    %v559 = vunpack.c.l.s4 1983009808
    %v560 = vunpack.c.0.s8 %v559
    %v561 = vlaneseq
    %v562 = vshrl.u32 %v561, 7
    %v563 = vsub.s32 %v560, %v562
    %v564 = vrot.slane %v557, %v563
    %566 = vst [vmem:[#allocation9] sm:$0xf] %v564
    // Predicated region
    $region26: #{tpu_custom_call.1} parent=1 // pred_check
      _
    $region27: #{tpu_custom_call.1} parent=1 // pred_check_branch
      %568 = sbr.rel (0) target = $region29
    $region28: #{tpu_custom_call.1} parent=1 // pred_region
      %s570 = ssub.s32 64, 64
      %571 = vsyncadd [#allocation4], %s570
      %s573 = sshll.u32 [#allocation9], 4
      %s574 = int_to_ptr.vmem [resolvable:$true] %s573
      %576 = dma.vmem_to_hbm [thread:$0]  %s574, 64, %s3, [#allocation4]
    $region29: #{tpu_custom_call.1} parent=1 // pred_fallthru
      _
    // Predicated region
    $region30: #{tpu_custom_call.1} parent=1 // pred_check
      _
    $region31: #{tpu_custom_call.1} parent=1 // pred_check_branch
      %578 = sbr.rel (0) target = $region33
    $region32: #{tpu_custom_call.1} parent=1 // pred_region
      %579 = dma.done [#allocation4], 64
    $region33: #{tpu_custom_call.1} parent=1 // pred_fallthru
      _
    %580 = vsyncpa [#allocation3], 1
    %581 = vsyncpa [#allocation8], 1
    %582 = vsyncpa [#allocation4], 1
    %583 = vsyncpa [#allocation5], 1

</llo_original>
